<compile_context>
chip_gen: v7x
topology: tpu7x:2x2x1
jax: 0.10.0
libtpu: 0.0.40
codegen_flags: <defaults>
</compile_context>

<pallas_src>
import jax
import jax.numpy as jnp
from jax import lax
from jax.experimental import pallas as pl
from jax.experimental.pallas import tpu as pltpu

_LANES = 128
_TILE_ROWS = 8192                 # 8192 x 128 x 4B = 4 MiB per f32 buffer
_VMEM_LIMIT_BYTES = 32 << 20      # fits v5e/v6e (128 MiB) and v7x (64 MiB)
_SMALL_INPUT_BYTES = 1 << 20      # below this, fused XLA clamp wins


def _row_tile_semantics():
    """CORE_PARALLEL only on v7x (2 TCs); 'parallel' elsewhere (always lowers)."""
    try:
        kind = jax.devices()[0].device_kind.lower()
    except Exception:
        kind = ""
    if "v7" in kind and hasattr(pltpu, "CORE_PARALLEL"):
        return (pltpu.CORE_PARALLEL,)
    return ("parallel",)


def _clip_boxes_xla(boxes, width, height):
    """Small-input fallback: plain fused XLA clamp."""
    x1 = jnp.maximum(boxes[..., 0], 0)
    y1 = jnp.maximum(boxes[..., 1], 0)
    x2 = jnp.minimum(boxes[..., 2], width)
    y2 = jnp.minimum(boxes[..., 3], height)
    return jnp.stack([x1, y1, x2, y2], axis=-1).astype(boxes.dtype)


def _clip_kernel(width, height):
    """Kernel factory; width/height are static Python ints baked as scalars."""

    def kernel(x_ref, o_ref):
        x = x_ref[...]
        # Coordinate pattern [x1, y1, x2, y2] repeats every 4 lanes across the
        # 128-lane vreg.  Rebuild the per-lane bounds from a lane iota so no
        # array constants are captured by the trace.
        lane = lax.broadcasted_iota(jnp.int32, (1, _LANES), 1)
        coord = lane & 3                       # 0:x1 1:y1 2:x2 3:y2
        is_lo = coord < 2                      # x1/y1 -> clamp at 0 from below
        hi = jnp.where(coord == 2, width, height).astype(x.dtype)
        o_ref[...] = jnp.where(is_lo, jnp.maximum(x, 0), jnp.minimum(x, hi))

    return kernel


def clip_boxes(boxes, img, *, min_pallas_bytes=_SMALL_INPUT_BYTES):
    """Pallas equivalent of ClipBoxes.forward(boxes, img)."""
    B, N, C = boxes.shape
    assert C == 4, "boxes last dim must be 4 ([x1, y1, x2, y2])"
    dtype = boxes.dtype
    assert jnp.issubdtype(dtype, jnp.floating) or jnp.issubdtype(dtype, jnp.integer), (
        f"unsupported box dtype {dtype}")
    height, width = int(img.shape[2]), int(img.shape[3])

    total = B * N * 4
    if total == 0:
        return boxes  # nothing to clip

    itemsize = jnp.dtype(dtype).itemsize
    if total * itemsize < min_pallas_bytes:
        # Custom-call dispatch + per-step overhead dominates tiny tensors.
        return _clip_boxes_xla(boxes, width, height)

    # Lane-dense flatten; pad only to a 128-lane multiple (<=127 elements).
    rows = pl.cdiv(total, _LANES)
    lane_pad = rows * _LANES - total
    flat = boxes.reshape(-1)
    if lane_pad:
        flat = jnp.pad(flat, (0, lane_pad))
    slab = flat.reshape(rows, _LANES)

    # Full-array block when small; otherwise 8-row-aligned tiles, with the
    # ragged last tile handled by Pallas' edge-block masking.
    block_rows = rows if rows <= _TILE_ROWS else _TILE_ROWS
    grid_rows = pl.cdiv(rows, block_rows)

    out_slab = pl.pallas_call(
        _clip_kernel(width, height),
        out_shape=jax.ShapeDtypeStruct((rows, _LANES), dtype),
        grid_spec=pl.GridSpec(
            grid=(grid_rows,),
            in_specs=[pl.BlockSpec((block_rows, _LANES), lambda i: (i, 0))],
            out_specs=pl.BlockSpec((block_rows, _LANES), lambda i: (i, 0)),
        ),
        compiler_params=pltpu.CompilerParams(
            dimension_semantics=_row_tile_semantics(),
            vmem_limit_bytes=_VMEM_LIMIT_BYTES),
        cost_estimate=pl.CostEstimate(
            flops=2 * rows * _LANES,
            transcendentals=0,
            bytes_accessed=2 * rows * _LANES * itemsize),
    )(slab)

    out_flat = out_slab.reshape(-1)
    if lane_pad:
        out_flat = out_flat[:total]
    return out_flat.reshape(B, N, 4)


if __name__ == "__main__":
    key = jax.random.PRNGKey(0)
    k_boxes, k_img = jax.random.split(key)

    B, N = 2, 8
    C, H, W = 4, 16, 16

    # Boxes deliberately spilling outside [0, W] x [0, H] to exercise clipping.
    boxes = jax.random.uniform(
        k_boxes, (B, N, 4), dtype=jnp.float32, minval=-8.0, maxval=24.0)
    img = jax.random.normal(k_img, (B, C, H, W), dtype=jnp.float32)

    # Pure-JAX reference.
    ref = boxes
    ref = ref.at[:, :, 0].set(jnp.maximum(boxes[:, :, 0], 0.0))
    ref = ref.at[:, :, 1].set(jnp.maximum(boxes[:, :, 1], 0.0))
    ref = ref.at[:, :, 2].set(jnp.minimum(boxes[:, :, 2], float(W)))
    ref = ref.at[:, :, 3].set(jnp.minimum(boxes[:, :, 3], float(H)))

    # 1) Force the Pallas path on the small demo input.
    out = jax.block_until_ready(clip_boxes(boxes, img, min_pallas_bytes=0))
    assert out.shape == boxes.shape and out.dtype == boxes.dtype
    assert jnp.allclose(out, ref), "Pallas path mismatch vs reference"

    # 2) Default threshold -> small-input XLA fallback path.
    out_fb = jax.block_until_ready(clip_boxes(boxes, img))
    assert out_fb.shape == boxes.shape and out_fb.dtype == boxes.dtype
    assert jnp.allclose(out_fb, ref), "fallback path mismatch vs reference"

    print("KERNEL_OK")
</pallas_src>

<mosaic_0001>
module attributes {stable_mosaic.version = 11 : i64} {
  func.func @kernel(%arg0: i32, %arg1: memref<1x128xf32, #tpu.memory_space<vmem>>, %arg2: memref<1x128xf32, #tpu.memory_space<vmem>>) attributes {dimension_semantics = [#tpu.dimension_semantics<parallel>], iteration_bounds = array<i64: 1>, scalar_prefetch = 0 : i64, scratch_operands = 0 : i64, tpu.core_type = #tpu.core_type<tc>, window_params = [{transform_indices = @transform_0, window_bounds = array<i64: 1, 128>}, {transform_indices = @transform_1, window_bounds = array<i64: 1, 128>}]} {
    %c0 = arith.constant 0 : index
    %c0_0 = arith.constant 0 : index
    %0 = vector.load %arg1[%c0, %c0_0] : memref<1x128xf32, #tpu.memory_space<vmem>>, vector<1x128xf32>
    %1 = tpu.iota {dimensions = array<i32: 1>} : vector<1x128xi32>
    %c3_i32 = arith.constant 3 : i32
    %2 = vector.broadcast %c3_i32 : i32 to vector<1x128xi32>
    %3 = arith.andi %1, %2 : vector<1x128xi32>
    %c2_i32 = arith.constant 2 : i32
    %4 = vector.broadcast %c2_i32 : i32 to vector<1x128xi32>
    %5 = arith.cmpi slt, %3, %4 : vector<1x128xi32>
    %c2_i32_1 = arith.constant 2 : i32
    %6 = vector.broadcast %c2_i32_1 : i32 to vector<1x128xi32>
    %7 = arith.cmpi eq, %3, %6 : vector<1x128xi32>
    %c16_i32 = arith.constant 16 : i32
    %c16_i32_2 = arith.constant 16 : i32
    %8 = vector.broadcast %c16_i32 : i32 to vector<1x128xi32>
    %9 = vector.broadcast %c16_i32_2 : i32 to vector<1x128xi32>
    %10 = arith.select %7, %8, %9 : vector<1x128xi1>, vector<1x128xi32>
    %11 = arith.sitofp %10 : vector<1x128xi32> to vector<1x128xf32>
    %cst = arith.constant 0.000000e+00 : f32
    %12 = vector.broadcast %cst : f32 to vector<1x128xf32>
    %13 = arith.maximumf %0, %12 : vector<1x128xf32>
    %14 = arith.minimumf %0, %11 : vector<1x128xf32>
    %15 = arith.select %5, %13, %14 : vector<1x128xi1>, vector<1x128xf32>
    %c0_3 = arith.constant 0 : index
    %c0_4 = arith.constant 0 : index
    %16 = vector.load %arg2[%c0_3, %c0_4] : memref<1x128xf32, #tpu.memory_space<vmem>>, vector<1x128xf32>
    tpu.vector_store %arg2[%c0_3, %c0_4], %15 {strides = array<i32>} : memref<1x128xf32, #tpu.memory_space<vmem>>, vector<1x128xf32>,
    return
  }
  func.func @transform_0(%arg0: i32) -> (i32, i32) {
    %c0_i32 = arith.constant 0 : i32
    %c0_i32_0 = arith.constant 0 : i32
    return %arg0, %c0_i32 : i32, i32
  }
  func.func @transform_1(%arg0: i32) -> (i32, i32) {
    %c0_i32 = arith.constant 0 : i32
    %c0_i32_0 = arith.constant 0 : i32
    return %arg0, %c0_i32 : i32, i32
  }
}

</mosaic_0001>

<llo_original>
// kernel: tpu_custom_call.1
$region0: #{tpu_custom_call.1}
  #allocation0 [shape = 'u32[]', space=smem, size = 0x4, offset = 0x4, fixed_abs, tag = 'smem constant byte address 0x4 - core index']
  #allocation1 [shape = 'u32[144,128]{1,0:T(1,128)}', space=vmem, size = 0x12000, scoped, tag = 'internal scratch']
  %s0 = inlined_call_operand.hbm [shape: f32[1,128], index: 0, kind: input, shape index: {}]
  %s1 = inlined_call_operand.hbm [shape: f32[1,128], index: 1, kind: output, shape index: {}]
  %s2 = sld [smem:[#allocation0]]
  $region18: #{tpu_custom_call.1} parent=0
    _
  %s4 = ssub.s32 1, %s2
  %s5 = scalar_select 0, %s4, %s2
  $region1: #{tpu_custom_call.1} parent=0
    #allocation2 [shape = 'u8[512]{0}', space=vmem, size = 0x400, scoped, tag = 'input window, operand 0, single buffered']
    #allocation3 [shape = 's32[1]{0}', space=sflag, size = 0x4, scoped, tag = 'scoped memory for tpu_custom_call.1']
    #allocation4 [shape = 's32[1]{0}', space=sflag, size = 0x4, scoped, tag = 'scoped memory for tpu_custom_call.1']
    #allocation5 [shape = 'u8[512]{0}', space=vmem, size = 0x400, scoped, tag = 'output window, operand 0, single buffered']
    %6 = vsyncpa [#allocation3], 0
    %7 = vsyncpa [#allocation4], 0
    // Predicated region
    $region2: #{tpu_custom_call.1} parent=1 // pred_check
      _
    $region3: #{tpu_custom_call.1} parent=1 // pred_check_branch
      %9 = sbr.rel (0) target = $region5
    $region4: #{tpu_custom_call.1} parent=1 // pred_region
      %s11 = ssub.s32 16, 16
      %12 = vsyncadd [#allocation3], %s11
      %s14 = sshll.u32 [#allocation2], 4
      %s15 = int_to_ptr.vmem [resolvable:$true] %s14
      %17 = dma.hbm_to_vmem [thread:$0]  %s0, 16, %s15, [#allocation3]
    $region5: #{tpu_custom_call.1} parent=1 // pred_fallthru
      _
    // Predicated region
    $region6: #{tpu_custom_call.1} parent=1 // pred_check
      _
    $region7: #{tpu_custom_call.1} parent=1 // pred_check_branch
      %19 = sbr.rel (0) target = $region9
    $region8: #{tpu_custom_call.1} parent=1 // pred_region
      %20 = dma.done [#allocation3], 16
    $region9: #{tpu_custom_call.1} parent=1 // pred_fallthru
      _
    %v21 = vld [vmem:[#allocation2] sm:$0x1]
    %v22 = vlaneseq
    %v23 = vand.u32 %v22, 127
    %v24 = vand.u32 %v23, 3
    %vm25 = vcmp.lt.s32.totalorder %v24, 2
    %v26 = vmax.f32 %v21, 0.0
    %v27 = vmin.f32 %v21, 16.0
    %v28 = vsel %vm25, %v26, %v27
    %29 = vst [vmem:[#allocation5] sm:$0x1] %v28
    // Predicated region
    $region10: #{tpu_custom_call.1} parent=1 // pred_check
      _
    $region11: #{tpu_custom_call.1} parent=1 // pred_check_branch
      %31 = sbr.rel (0) target = $region13
    $region12: #{tpu_custom_call.1} parent=1 // pred_region
      %s33 = ssub.s32 16, 16
      %34 = vsyncadd [#allocation4], %s33
      %s36 = sshll.u32 [#allocation5], 4
      %s37 = int_to_ptr.vmem [resolvable:$true] %s36
      %39 = dma.vmem_to_hbm [thread:$0]  %s37, 16, %s1, [#allocation4]
    $region13: #{tpu_custom_call.1} parent=1 // pred_fallthru
      _
    // Predicated region
    $region14: #{tpu_custom_call.1} parent=1 // pred_check
      _
    $region15: #{tpu_custom_call.1} parent=1 // pred_check_branch
      %41 = sbr.rel (0) target = $region17
    $region16: #{tpu_custom_call.1} parent=1 // pred_region
      %42 = dma.done [#allocation4], 16
    $region17: #{tpu_custom_call.1} parent=1 // pred_fallthru
      _
    %43 = vsyncpa [#allocation3], 1
    %44 = vsyncpa [#allocation4], 1

</llo_original>
